<compile_context>
chip_gen: v5e
topology: v5e:2x2
jax: 0.10.0
libtpu: 0.0.40
codegen_flags: <defaults>
</compile_context>

<pallas_src>
import jax
import jax.numpy as jnp
from jax.experimental import pallas as pl
from jax.experimental.pallas import tpu as pltpu


def _gst_kernel(x_ref, w_ref, b_ref, vbd_ref, seg_ref, hexp_ref, o_ref):
    # All-head, all-fold attention scores in one MXU matmul (Q projection and
    # 1/sqrt(d_k) already folded into w_ref / b_ref at prep time).
    s = jnp.dot(x_ref[...], w_ref[...],
                preferred_element_type=jnp.float32) + b_ref[...]          # [tn, b*H*T]
    # Row-wide max is a per-row constant -> per-(fold, head) softmax unchanged.
    s = s - jnp.max(s, axis=-1, keepdims=True)
    p = jnp.exp(s)
    # Per-(fold, head) softmax denominators via a small block-indicator matmul.
    denom = jnp.dot(p, seg_ref[...], preferred_element_type=jnp.float32)  # [tn, b*H]
    denom = jnp.maximum(denom, 1e-30)       # guard: full-segment exp underflow
    recip = pl.reciprocal(denom, approx=True)                             # EUP slot
    # Un-normalized head outputs; block-diagonal V concatenates heads per fold,
    # so this is a single lane-dense [tn, b*E] result.
    out = jnp.dot(p, vbd_ref[...], preferred_element_type=jnp.float32)    # [tn, b*E]
    # Expand per-head reciprocals onto the output lane layout and normalize.
    scale = jnp.dot(recip, hexp_ref[...], preferred_element_type=jnp.float32)
    o_ref[...] = out * scale


def prepare_inference_params(params, *, num_heads, lane_fold=4):
    """Hoist every x-independent computation out of the per-call kernel and
    build the lane-folded, block-diagonal weight set."""
    wemo_t, bemo, embed, wq_t, wk_t, wv_t = params
    C = wemo_t.shape[0]
    E = wq_t.shape[1]
    assert E % num_heads == 0, "token_embedding_size must be divisible by num_heads"
    H = num_heads
    d = E // H
    T = embed.shape[0]
    scale = 1.0 / (d ** 0.5)

    # x-independent key/value path.
    keys = jnp.tanh(embed)                           # [T, d_k]
    k = keys @ wk_t                                  # [T, E]
    v = keys @ wv_t                                  # [T, E]

    # Block-diagonal, pre-scaled K^T ([E, H*T]) and block-diagonal V ([H*T, E]).
    k_bd = jnp.zeros((E, H * T), jnp.float32)
    v_bd = jnp.zeros((H * T, E), jnp.float32)
    for h in range(H):
        k_bd = k_bd.at[h * d:(h + 1) * d, h * T:(h + 1) * T].set(
            k[:, h * d:(h + 1) * d].T * scale)
        v_bd = v_bd.at[h * T:(h + 1) * T, h * d:(h + 1) * d].set(
            v[:, h * d:(h + 1) * d])

    # Fold cond_emo -> W_query -> scaled K^T into one score matrix (exact: no
    # nonlinearity anywhere along that chain).
    w_fused = wemo_t @ wq_t                          # [C, E]
    b_fused = bemo @ wq_t                            # [E]
    w_score = w_fused @ k_bd                         # [C, H*T]
    b_score = (b_fused @ k_bd)[None, :]              # [1, H*T]

    # Denominator reducer ([H*T, H]) and expander ([H, E]).
    seg = jnp.kron(jnp.eye(H, dtype=jnp.float32), jnp.ones((T, 1), jnp.float32))
    hexp = jnp.kron(jnp.eye(H, dtype=jnp.float32), jnp.ones((1, d), jnp.float32))

    # Lane-fold `lane_fold` logical rows per physical row (kron expansion).
    b = int(lane_fold)
    eye_b = jnp.eye(b, dtype=jnp.float32)
    return dict(
        w_score=jnp.kron(eye_b, w_score),            # [b*C, b*H*T]
        b_score=jnp.tile(b_score, (1, b)),           # [1, b*H*T]
        v_bd=jnp.kron(eye_b, v_bd),                  # [b*H*T, b*E]
        seg=jnp.kron(eye_b, seg),                    # [b*H*T, b*H]
        hexp=jnp.kron(eye_b, hexp),                  # [b*H, b*E]
        lane_fold=b, e=E, c=C)


def gst_no_reff_forward(x, infer_params, *, tile_rows=2048):
    """x: [N, emoin_channels] -> style_embed: [N, token_embedding_size, 1]."""
    w = infer_params["w_score"]
    bvec = infer_params["b_score"]
    vbd = infer_params["v_bd"]
    seg = infer_params["seg"]
    hexp = infer_params["hexp"]
    fold = infer_params["lane_fold"]
    E = infer_params["e"]

    N, C = x.shape
    # Pad only to a multiple of the lane-fold factor (<= fold-1 rows). The
    # ragged last batch TILE is handled by Pallas edge masking instead of a
    # full jnp.pad copy of x.
    N_pad = ((N + fold - 1) // fold) * fold
    if N_pad != N:
        x = jnp.pad(x, ((0, N_pad - N), (0, 0)))
    Np = N_pad // fold                       # physical (folded) rows
    Cf = C * fold
    Ef = E * fold
    HTf = w.shape[1]
    Hf = seg.shape[1]

    x_f = x.reshape(Np, Cf)                  # row-major: pure layout, no copy

    # Batch tiling: large tiles amortize the ~0.35us/step overhead; keep >= 2
    # grid steps when possible so v7x's two TensorCores both get work.
    if Np <= 8:
        tn = Np
    else:
        tn = min(int(tile_rows), -(-Np // 2))
        tn = max(8, (tn // 8) * 8)           # sublane multiple
    grid_n = -(-Np // tn)

    # Explicit VMEM budget (v7x: 64 MiB physical / 32 MiB scoped default).
    lane = 128
    pad_c = -(-Cf // lane) * lane
    pad_ht = -(-HTf // lane) * lane
    pad_h = -(-Hf // lane) * lane
    pad_e = -(-Ef // lane) * lane
    blk_bytes = 4 * tn * (pad_c + pad_e)                       # x + out per buffer
    wt_bytes = 4 * (Cf * pad_ht + pad_ht + HTf * pad_e + HTf * pad_h + Hf * pad_e)
    scratch_bytes = 4 * tn * (3 * pad_ht + 2 * pad_e + pad_h)  # rough intermediates
    vmem_limit = int(min(32 << 20,
                         max(16 << 20,
                             2 * blk_bytes + 2 * wt_bytes + scratch_bytes + (4 << 20))))

    out = pl.pallas_call(
        _gst_kernel,
        out_shape=jax.ShapeDtypeStruct((Np, Ef), jnp.float32),
        grid=(grid_n,),
        in_specs=[
            pl.BlockSpec((tn, Cf), lambda i: (i, 0)),      # folded x (streamed)
            pl.BlockSpec((Cf, HTf), lambda i: (0, 0)),     # fused score weight (resident)
            pl.BlockSpec((1, HTf), lambda i: (0, 0)),      # fused score bias
            pl.BlockSpec((HTf, Ef), lambda i: (0, 0)),     # block-diag V
            pl.BlockSpec((HTf, Hf), lambda i: (0, 0)),     # denominator reducer
            pl.BlockSpec((Hf, Ef), lambda i: (0, 0)),      # denominator expander
        ],
        out_specs=pl.BlockSpec((tn, Ef), lambda i: (i, 0)),
        compiler_params=pltpu.CompilerParams(
            dimension_semantics=("parallel",),             # shard batch over TCs
            vmem_limit_bytes=vmem_limit),
    )(x_f, w, bvec, vbd, seg, hexp)

    out = out.reshape(N_pad, E)[:N]
    # Match nn.Module semantics: STL output [N, 1, E] -> transpose(1, 2) -> [N, E, 1].
    return out[:, :, None]


def make_params(key, *, token_num, token_embedding_size, num_heads,
                ref_enc_gru_size, emoin_channels):
    d_k = token_embedding_size // num_heads
    ks = jax.random.split(key, 6)
    # Stored pre-transposed ([in, out]) so math is x @ W directly.
    wemo_t = jax.random.normal(ks[0], (emoin_channels, ref_enc_gru_size), jnp.float32) * 0.1
    bemo = jax.random.normal(ks[1], (ref_enc_gru_size,), jnp.float32) * 0.1
    embed = jax.random.normal(ks[2], (token_num, d_k), jnp.float32) * 0.5
    wq_t = jax.random.normal(ks[3], (ref_enc_gru_size, token_embedding_size), jnp.float32) * 0.1
    wk_t = jax.random.normal(ks[4], (d_k, token_embedding_size), jnp.float32) * 0.1
    wv_t = jax.random.normal(ks[5], (d_k, token_embedding_size), jnp.float32) * 0.1
    return (wemo_t, bemo, embed, wq_t, wk_t, wv_t)


def reference_forward(x, params, *, num_heads):
    """Pure-JAX reference mirroring the PyTorch STL / MultiHeadAttention math."""
    wemo_t, bemo, embed, wq_t, wk_t, wv_t = params
    E = wq_t.shape[1]
    d = E // num_heads
    enc = x @ wemo_t + bemo                              # [N, gru]
    keys = jnp.tanh(embed)                               # [T, d_k]
    q = enc @ wq_t                                       # [N, E]
    k = keys @ wk_t                                      # [T, E]
    v = keys @ wv_t                                      # [T, E]
    outs = []
    for h in range(num_heads):
        sl = slice(h * d, (h + 1) * d)
        s = (q[:, sl] @ k[:, sl].T) / (d ** 0.5)
        p = jax.nn.softmax(s, axis=-1)
        outs.append(p @ v[:, sl])
    out = jnp.concatenate(outs, axis=-1)                 # [N, E]
    return out[:, :, None]                               # [N, E, 1]


if __name__ == "__main__":
    # Small, self-consistent hyper-params (ref_enc_filters / n_mel_channels are
    # unused by GSTNoReff's forward path).
    token_num = 10
    token_embedding_size = 32
    num_heads = 4
    ref_enc_gru_size = 32
    emoin_channels = 16

    key = jax.random.PRNGKey(0)
    kx, kp, kx2 = jax.random.split(key, 3)
    params = make_params(kp, token_num=token_num,
                         token_embedding_size=token_embedding_size,
                         num_heads=num_heads, ref_enc_gru_size=ref_enc_gru_size,
                         emoin_channels=emoin_channels)

    # One-time (per-checkpoint) folding / precompute; not part of the per-call path.
    infer_params = prepare_inference_params(params, num_heads=num_heads, lane_fold=4)

    # --- small-batch check (single full-array tile) ---
    N = 2
    x = jax.random.normal(kx, (N, emoin_channels), jnp.float32)
    out = jax.block_until_ready(gst_no_reff_forward(x, infer_params))
    ref = reference_forward(x, params, num_heads=num_heads)
    assert out.shape == (N, token_embedding_size, 1)
    # Tolerance loosened slightly for prep-time weight folding + approx EUP reciprocal.
    assert jnp.allclose(out, ref, atol=2e-3, rtol=2e-3)

    # --- larger batch: multi-step grid (exercises both v7x TCs), ragged last
    # tile via Pallas edge masking, and the fold-remainder pad path. ---
    N2 = 602
    x2 = jax.random.normal(kx2, (N2, emoin_channels), jnp.float32)
    out2 = jax.block_until_ready(gst_no_reff_forward(x2, infer_params, tile_rows=64))
    ref2 = reference_forward(x2, params, num_heads=num_heads)
    assert out2.shape == (N2, token_embedding_size, 1)
    assert jnp.allclose(out2, ref2, atol=2e-3, rtol=2e-3)

    print("KERNEL_OK")
</pallas_src>

<mosaic_0001>
module attributes {stable_mosaic.version = 11 : i64} {
  func.func @_gst_kernel(%arg0: i32, %arg1: memref<1x64xf32, #tpu.memory_space<vmem>>, %arg2: memref<64x160xf32, #tpu.memory_space<vmem>>, %arg3: memref<1x160xf32, #tpu.memory_space<vmem>>, %arg4: memref<160x128xf32, #tpu.memory_space<vmem>>, %arg5: memref<160x16xf32, #tpu.memory_space<vmem>>, %arg6: memref<16x128xf32, #tpu.memory_space<vmem>>, %arg7: memref<1x128xf32, #tpu.memory_space<vmem>>) attributes {dimension_semantics = [#tpu.dimension_semantics<parallel>], iteration_bounds = array<i64: 1>, scalar_prefetch = 0 : i64, scratch_operands = 0 : i64, tpu.core_type = #tpu.core_type<tc>, window_params = [{transform_indices = @transform_0, window_bounds = array<i64: 1, 64>}, {pipeline_mode = #tpu.pipeline_mode<synchronous>, transform_indices = @transform_1, window_bounds = array<i64: 64, 160>}, {pipeline_mode = #tpu.pipeline_mode<synchronous>, transform_indices = @transform_2, window_bounds = array<i64: 1, 160>}, {pipeline_mode = #tpu.pipeline_mode<synchronous>, transform_indices = @transform_3, window_bounds = array<i64: 160, 128>}, {pipeline_mode = #tpu.pipeline_mode<synchronous>, transform_indices = @transform_4, window_bounds = array<i64: 160, 16>}, {pipeline_mode = #tpu.pipeline_mode<synchronous>, transform_indices = @transform_5, window_bounds = array<i64: 16, 128>}, {transform_indices = @transform_6, window_bounds = array<i64: 1, 128>}]} {
    %c0 = arith.constant 0 : index
    %c0_0 = arith.constant 0 : index
    %0 = vector.load %arg1[%c0, %c0_0] : memref<1x64xf32, #tpu.memory_space<vmem>>, vector<1x64xf32>
    %c0_1 = arith.constant 0 : index
    %c0_2 = arith.constant 0 : index
    %1 = vector.load %arg2[%c0_1, %c0_2] : memref<64x160xf32, #tpu.memory_space<vmem>>, vector<64x160xf32>
    %cst = arith.constant dense<0.000000e+00> : vector<1x160xf32>
    %2 = tpu.matmul %0, %1, %cst {dimension_numbers = #tpu.dot_dimension_numbers<[1], [0], [0], [1], [0, 0, 1, 1], [], []>} : vector<1x64xf32>, vector<64x160xf32>, vector<1x160xf32> -> vector<1x160xf32>
    %c0_3 = arith.constant 0 : index
    %c0_4 = arith.constant 0 : index
    %3 = vector.load %arg3[%c0_3, %c0_4] : memref<1x160xf32, #tpu.memory_space<vmem>>, vector<1x160xf32>
    %4 = arith.addf %2, %3 : vector<1x160xf32>
    %cst_5 = arith.constant dense<0xFF800000> : vector<1xf32>
    %5 = vector.multi_reduction <maximumf>, %4, %cst_5 [1] : vector<1x160xf32> to vector<1xf32>
    %6 = vector.shape_cast %5 : vector<1xf32> to vector<1x1xf32>
    %7 = vector.broadcast %6 : vector<1x1xf32> to vector<1x160xf32>
    %8 = arith.subf %4, %7 : vector<1x160xf32>
    %9 = math.exp %8 : vector<1x160xf32>
    %c0_6 = arith.constant 0 : index
    %c0_7 = arith.constant 0 : index
    %10 = vector.load %arg5[%c0_6, %c0_7] : memref<160x16xf32, #tpu.memory_space<vmem>>, vector<160x16xf32>
    %cst_8 = arith.constant dense<0.000000e+00> : vector<1x16xf32>
    %11 = tpu.matmul %9, %10, %cst_8 {dimension_numbers = #tpu.dot_dimension_numbers<[1], [0], [0], [1], [0, 0, 1, 1], [], []>} : vector<1x160xf32>, vector<160x16xf32>, vector<1x16xf32> -> vector<1x16xf32>
    %cst_9 = arith.constant 1.000000e-30 : f32
    %12 = vector.broadcast %cst_9 : f32 to vector<1x16xf32>
    %13 = arith.maximumf %11, %12 : vector<1x16xf32>
    %14 = tpu.reciprocal %13 {approx = true} : vector<1x16xf32> -> vector<1x16xf32>
    %c0_10 = arith.constant 0 : index
    %c0_11 = arith.constant 0 : index
    %15 = vector.load %arg4[%c0_10, %c0_11] : memref<160x128xf32, #tpu.memory_space<vmem>>, vector<160x128xf32>
    %cst_12 = arith.constant dense<0.000000e+00> : vector<1x128xf32>
    %16 = tpu.matmul %9, %15, %cst_12 {dimension_numbers = #tpu.dot_dimension_numbers<[1], [0], [0], [1], [0, 0, 1, 1], [], []>} : vector<1x160xf32>, vector<160x128xf32>, vector<1x128xf32> -> vector<1x128xf32>
    %c0_13 = arith.constant 0 : index
    %c0_14 = arith.constant 0 : index
    %17 = vector.load %arg6[%c0_13, %c0_14] : memref<16x128xf32, #tpu.memory_space<vmem>>, vector<16x128xf32>
    %cst_15 = arith.constant dense<0.000000e+00> : vector<1x128xf32>
    %18 = tpu.matmul %14, %17, %cst_15 {dimension_numbers = #tpu.dot_dimension_numbers<[1], [0], [0], [1], [0, 0, 1, 1], [], []>} : vector<1x16xf32>, vector<16x128xf32>, vector<1x128xf32> -> vector<1x128xf32>
    %19 = arith.mulf %16, %18 : vector<1x128xf32>
    %c0_16 = arith.constant 0 : index
    %c0_17 = arith.constant 0 : index
    %20 = vector.load %arg7[%c0_16, %c0_17] : memref<1x128xf32, #tpu.memory_space<vmem>>, vector<1x128xf32>
    tpu.vector_store %arg7[%c0_16, %c0_17], %19 {strides = array<i32>} : memref<1x128xf32, #tpu.memory_space<vmem>>, vector<1x128xf32>,
    return
  }
  func.func @transform_0(%arg0: i32) -> (i32, i32) {
    %c0_i32 = arith.constant 0 : i32
    %c0_i32_0 = arith.constant 0 : i32
    return %arg0, %c0_i32 : i32, i32
  }
  func.func @transform_1(%arg0: i32) -> (i32, i32) {
    %c0_i32 = arith.constant 0 : i32
    %c0_i32_0 = arith.constant 0 : i32
    %c0_i32_1 = arith.constant 0 : i32
    return %c0_i32, %c0_i32_0 : i32, i32
  }
  func.func @transform_2(%arg0: i32) -> (i32, i32) {
    %c0_i32 = arith.constant 0 : i32
    %c0_i32_0 = arith.constant 0 : i32
    %c0_i32_1 = arith.constant 0 : i32
    return %c0_i32, %c0_i32_0 : i32, i32
  }
  func.func @transform_3(%arg0: i32) -> (i32, i32) {
    %c0_i32 = arith.constant 0 : i32
    %c0_i32_0 = arith.constant 0 : i32
    %c0_i32_1 = arith.constant 0 : i32
    return %c0_i32, %c0_i32_0 : i32, i32
  }
  func.func @transform_4(%arg0: i32) -> (i32, i32) {
    %c0_i32 = arith.constant 0 : i32
    %c0_i32_0 = arith.constant 0 : i32
    %c0_i32_1 = arith.constant 0 : i32
    return %c0_i32, %c0_i32_0 : i32, i32
  }
  func.func @transform_5(%arg0: i32) -> (i32, i32) {
    %c0_i32 = arith.constant 0 : i32
    %c0_i32_0 = arith.constant 0 : i32
    %c0_i32_1 = arith.constant 0 : i32
    return %c0_i32, %c0_i32_0 : i32, i32
  }
  func.func @transform_6(%arg0: i32) -> (i32, i32) {
    %c0_i32 = arith.constant 0 : i32
    %c0_i32_0 = arith.constant 0 : i32
    return %arg0, %c0_i32 : i32, i32
  }
}

</mosaic_0001>

<llo_original>
// kernel: tpu_custom_call.1
$region0: #{tpu_custom_call.1}
  #allocation0 [shape = 'u32[]', space=smem, size = 0x4, offset = 0x4, fixed_abs, tag = 'smem constant byte address 0x4 - core index']
  #allocation1 [shape = 'u32[72,128]{1,0:T(1,128)}', space=vmem, size = 0x9000, scoped, tag = 'internal scratch']
  %s0 = inlined_call_operand.vmem [shape: f32[1,64], index: 0, kind: input, shape index: {}]
  %s1 = inlined_call_operand.hbm [shape: f32[64,160], index: 1, kind: input, shape index: {}]
  %s2 = inlined_call_operand.vmem [shape: f32[1,160], index: 2, kind: input, shape index: {}]
  %s3 = inlined_call_operand.vmem [shape: f32[160,128], index: 3, kind: input, shape index: {}]
  %s4 = inlined_call_operand.vmem [shape: f32[160,16], index: 4, kind: input, shape index: {}]
  %s5 = inlined_call_operand.vmem [shape: f32[16,128], index: 5, kind: input, shape index: {}]
  %s6 = inlined_call_operand.hbm [shape: f32[1,128], index: 6, kind: output, shape index: {}]
  %s7 = sld [smem:[#allocation0]]
  $region38: #{tpu_custom_call.1} parent=0
    _
  %s9 = ssub.s32 1, %s7
  %s10 = scalar_select 0, %s9, %s7
  $region1: #{tpu_custom_call.1} parent=0
    #allocation2 [shape = 'u8[65536]{0}', space=vmem, size = 0x10000, scoped, tag = 'input window, operand 1, single buffered']
    #allocation3 [shape = 's32[1]{0}', space=sflag, size = 0x4, scoped, tag = 'scoped memory for tpu_custom_call.1']
    #allocation4 [shape = 's32[1]{0}', space=sflag, size = 0x4, scoped, tag = 'scoped memory for tpu_custom_call.1']
    #allocation5 [shape = 'u8[512]{0}', space=vmem, size = 0x400, scoped, tag = 'output window, operand 0, single buffered']
    %11 = vsyncpa [#allocation3], 0
    %12 = vsyncpa [#allocation4], 0
    // Predicated region
    $region2: #{tpu_custom_call.1} parent=1 // pred_check
      _
    $region3: #{tpu_custom_call.1} parent=1 // pred_check_branch
      %14 = sbr.rel (0) target = $region5
    $region4: #{tpu_custom_call.1} parent=1 // pred_region
      _
    $region5: #{tpu_custom_call.1} parent=1 // pred_fallthru
      _
    // Predicated region
    $region6: #{tpu_custom_call.1} parent=1 // pred_check
      _
    $region7: #{tpu_custom_call.1} parent=1 // pred_check_branch
      %16 = sbr.rel (0) target = $region9
    $region8: #{tpu_custom_call.1} parent=1 // pred_region
      %18 = vsyncadd [#allocation3], 0
      %s19 = sshll.u32 %s1, 4
      %s20 = int_to_ptr.hbm [resolvable:$true] %s19
      %s21 = sshll.u32 [#allocation2], 4
      %s22 = int_to_ptr.vmem [resolvable:$true] %s21
      %27 = dma.hbm_to_vmem [thread:$0]  %s20, 2048, %s22, [#allocation3], 256, 256, 16
    $region9: #{tpu_custom_call.1} parent=1 // pred_fallthru
      _
    // Predicated region
    $region10: #{tpu_custom_call.1} parent=1 // pred_check
      _
    $region11: #{tpu_custom_call.1} parent=1 // pred_check_branch
      %29 = sbr.rel (0) target = $region13
    $region12: #{tpu_custom_call.1} parent=1 // pred_region
      _
    $region13: #{tpu_custom_call.1} parent=1 // pred_fallthru
      _
    // Predicated region
    $region14: #{tpu_custom_call.1} parent=1 // pred_check
      _
    $region15: #{tpu_custom_call.1} parent=1 // pred_check_branch
      %31 = sbr.rel (0) target = $region17
    $region16: #{tpu_custom_call.1} parent=1 // pred_region
      _
    $region17: #{tpu_custom_call.1} parent=1 // pred_fallthru
      _
    // Predicated region
    $region18: #{tpu_custom_call.1} parent=1 // pred_check
      _
    $region19: #{tpu_custom_call.1} parent=1 // pred_check_branch
      %33 = sbr.rel (0) target = $region21
    $region20: #{tpu_custom_call.1} parent=1 // pred_region
      _
    $region21: #{tpu_custom_call.1} parent=1 // pred_fallthru
      _
    // Predicated region
    $region22: #{tpu_custom_call.1} parent=1 // pred_check
      _
    $region23: #{tpu_custom_call.1} parent=1 // pred_check_branch
      %35 = sbr.rel (0) target = $region25
    $region24: #{tpu_custom_call.1} parent=1 // pred_region
      _
    $region25: #{tpu_custom_call.1} parent=1 // pred_fallthru
      _
    // Predicated region
    $region26: #{tpu_custom_call.1} parent=1 // pred_check
      _
    $region27: #{tpu_custom_call.1} parent=1 // pred_check_branch
      %37 = sbr.rel (0) target = $region29
    $region28: #{tpu_custom_call.1} parent=1 // pred_region
      %39 = dma.done [#allocation3], 2048
    $region29: #{tpu_custom_call.1} parent=1 // pred_fallthru
      _
    %v40 = vld [vmem:[%s0] sm:$0x1]
    %v41 = vld [vmem:[#allocation2] sm:$0xff]
    %v42 = vld [vmem:[#allocation2 + $0x8] sm:$0xff]
    %v43 = vld [vmem:[#allocation2 + $0x10] sm:$0xff]
    %v44 = vld [vmem:[#allocation2 + $0x18] sm:$0xff]
    %v45 = vld [vmem:[#allocation2 + $0x20] sm:$0xff]
    %v46 = vld [vmem:[#allocation2 + $0x28] sm:$0xff]
    %v47 = vld [vmem:[#allocation2 + $0x30] sm:$0xff]
    %v48 = vld [vmem:[#allocation2 + $0x38] sm:$0xff]
    %v49 = vld [vmem:[#allocation2 + $0x40] sm:$0xff]
    %v50 = vld [vmem:[#allocation2 + $0x48] sm:$0xff]
    %v51 = vld [vmem:[#allocation2 + $0x50] sm:$0xff]
    %v52 = vld [vmem:[#allocation2 + $0x58] sm:$0xff]
    %v53 = vld [vmem:[#allocation2 + $0x60] sm:$0xff]
    %v54 = vld [vmem:[#allocation2 + $0x68] sm:$0xff]
    %v55 = vld [vmem:[#allocation2 + $0x70] sm:$0xff]
    %v56 = vld [vmem:[#allocation2 + $0x78] sm:$0xff]
    %v57 = vld [vmem:[%s2] sm:$0x3]
    %v59 = vperm.slane %v57, 0
    %v60 = vperm.slane %v57, 1
    %vm63 = vcmask 523264
    %v65 = vsel %vm63, %v40, 0
    %67 = vmatpush.msra.mxu0 0.0
    %68 = vmatpush.msra.mxu0 0.0
    %69 = vmatpush.msra.mxu0 0.0
    %70 = vmatpush.msra.mxu0 0.0
    %71 = vmatpush.msra.mxu0 0.0
    %72 = vmatpush.msra.mxu0 0.0
    %73 = vmatpush.msra.mxu0 0.0
    %74 = vmatpush.msra.mxu0 0.0
    %75 = vmatpush.msra.mxu0 %v55
    %76 = vmatpush.msra.mxu0 %v53
    %77 = vmatpush.msra.mxu0 %v51
    %78 = vmatpush.msra.mxu0 %v49
    %79 = vmatpush.msra.mxu0 %v47
    %80 = vmatpush.msra.mxu0 %v45
    %81 = vmatpush.msra.mxu0 %v43
    %82 = vmatpush.msra.mxu0 %v41
    %83 = vmatmul.f32.gmra.mxu0 %v65
    %v84 = vpop.f32.mrf.mxu0
    %v85 = vadd.f32 %v59, %v84
    %86 = vdwg.mxu0
    %87 = vmatpush.msra.mxu0 0.0
    %88 = vmatpush.msra.mxu0 0.0
    %89 = vmatpush.msra.mxu0 0.0
    %90 = vmatpush.msra.mxu0 0.0
    %91 = vmatpush.msra.mxu0 0.0
    %92 = vmatpush.msra.mxu0 0.0
    %93 = vmatpush.msra.mxu0 0.0
    %94 = vmatpush.msra.mxu0 0.0
    %95 = vmatpush.msra.mxu0 %v56
    %96 = vmatpush.msra.mxu0 %v54
    %97 = vmatpush.msra.mxu0 %v52
    %98 = vmatpush.msra.mxu0 %v50
    %99 = vmatpush.msra.mxu0 %v48
    %100 = vmatpush.msra.mxu0 %v46
    %101 = vmatpush.msra.mxu0 %v44
    %102 = vmatpush.msra.mxu0 %v42
    %103 = vmatmul.f32.gmra.mxu0 %v65
    %v104 = vpop.f32.mrf.mxu0
    %v105 = vadd.f32 %v60, %v104
    %106 = vdwg.mxu0
    %vm107 = vcmask 1040384
    %v108 = vsel %vm107, %v85, -inf
    %vm109 = vcmask 253952
    %v110 = vsel %vm109, %v105, -inf
    %v111 = vmax.f32 %v108, %v110
    %112 = vmax.xlane.f32.xlu0 %v111
    %v113 = vpop.xlane.xlu0 %112
    %v114 = vsub.f32 %v85, %v113
    %v115 = vsub.f32 %v105, %v113
    %v116 = vmul.f32 %v114, 1.442695
    %v117 = vpow.pop %v116
    %v118 = vmul.f32 %v115, 1.442695
    %v119 = vpow.pop %v118
    %v120 = vld [vmem:[%s4] sm:$0xff]
    %v121 = vld [vmem:[%s4 + $0x8] sm:$0xff]
    %v122 = vld [vmem:[%s4 + $0x10] sm:$0xff]
    %v123 = vld [vmem:[%s4 + $0x18] sm:$0xff]
    %v124 = vld [vmem:[%s4 + $0x20] sm:$0xff]
    %v125 = vld [vmem:[%s4 + $0x28] sm:$0xff]
    %v126 = vld [vmem:[%s4 + $0x30] sm:$0xff]
    %v127 = vld [vmem:[%s4 + $0x38] sm:$0xff]
    %v128 = vld [vmem:[%s4 + $0x40] sm:$0xff]
    %v129 = vld [vmem:[%s4 + $0x48] sm:$0xff]
    %v130 = vld [vmem:[%s4 + $0x50] sm:$0xff]
    %v131 = vld [vmem:[%s4 + $0x58] sm:$0xff]
    %v132 = vld [vmem:[%s4 + $0x60] sm:$0xff]
    %v133 = vld [vmem:[%s4 + $0x68] sm:$0xff]
    %v134 = vld [vmem:[%s4 + $0x70] sm:$0xff]
    %v135 = vld [vmem:[%s4 + $0x78] sm:$0xff]
    %v136 = vld [vmem:[%s4 + $0x80] sm:$0xff]
    %v137 = vld [vmem:[%s4 + $0x88] sm:$0xff]
    %v138 = vld [vmem:[%s4 + $0x90] sm:$0xff]
    %v139 = vld [vmem:[%s4 + $0x98] sm:$0xff]
    %vm140 = vcmask 261120
    %v142 = vsel %vm140, %v119, 0
    %144 = vmatpush.msra.mxu0 %v135
    %145 = vmatpush.msra.mxu0 %v134
    %146 = vmatpush.msra.mxu0 %v133
    %147 = vmatpush.msra.mxu0 %v132
    %148 = vmatpush.msra.mxu0 %v131
    %149 = vmatpush.msra.mxu0 %v130
    %150 = vmatpush.msra.mxu0 %v129
    %151 = vmatpush.msra.mxu0 %v128
    %152 = vmatpush.msra.mxu0 %v127
    %153 = vmatpush.msra.mxu0 %v126
    %154 = vmatpush.msra.mxu0 %v125
    %155 = vmatpush.msra.mxu0 %v124
    %156 = vmatpush.msra.mxu0 %v123
    %157 = vmatpush.msra.mxu0 %v122
    %158 = vmatpush.msra.mxu0 %v121
    %159 = vmatpush.msra.mxu0 %v120
    %160 = vmatmul.f32.gmra.mxu0 %v117
    %v161 = vpop.f32.mrf.mxu0
    %v162 = vadd.f32 0.0, %v161
    %163 = vdwg.mxu0
    %164 = vmatpush.msra.mxu0 0.0
    %165 = vmatpush.msra.mxu0 0.0
    %166 = vmatpush.msra.mxu0 0.0
    %167 = vmatpush.msra.mxu0 0.0
    %168 = vmatpush.msra.mxu0 0.0
    %169 = vmatpush.msra.mxu0 0.0
    %170 = vmatpush.msra.mxu0 0.0
    %171 = vmatpush.msra.mxu0 0.0
    %172 = vmatpush.msra.mxu0 0.0
    %173 = vmatpush.msra.mxu0 0.0
    %174 = vmatpush.msra.mxu0 0.0
    %175 = vmatpush.msra.mxu0 0.0
    %176 = vmatpush.msra.mxu0 %v139
    %177 = vmatpush.msra.mxu0 %v138
    %178 = vmatpush.msra.mxu0 %v137
    %179 = vmatpush.msra.mxu0 %v136
    %180 = vmatmul.f32.gmra.mxu0 %v142
    %v181 = vpop.f32.mrf.mxu0
    %v182 = vadd.f32 %v162, %v181
    %183 = vdwg.mxu0
    %v184 = vmax.f32 %v182, 1e-30
    %v185 = vrcp.pop %v184
    %v186 = vld [vmem:[%s3] sm:$0xff]
    %v187 = vld [vmem:[%s3 + $0x8] sm:$0xff]
    %v188 = vld [vmem:[%s3 + $0x10] sm:$0xff]
    %v189 = vld [vmem:[%s3 + $0x18] sm:$0xff]
    %v190 = vld [vmem:[%s3 + $0x20] sm:$0xff]
    %v191 = vld [vmem:[%s3 + $0x28] sm:$0xff]
    %v192 = vld [vmem:[%s3 + $0x30] sm:$0xff]
    %v193 = vld [vmem:[%s3 + $0x38] sm:$0xff]
    %v194 = vld [vmem:[%s3 + $0x40] sm:$0xff]
    %v195 = vld [vmem:[%s3 + $0x48] sm:$0xff]
    %v196 = vld [vmem:[%s3 + $0x50] sm:$0xff]
    %v197 = vld [vmem:[%s3 + $0x58] sm:$0xff]
    %v198 = vld [vmem:[%s3 + $0x60] sm:$0xff]
    %v199 = vld [vmem:[%s3 + $0x68] sm:$0xff]
    %v200 = vld [vmem:[%s3 + $0x70] sm:$0xff]
    %v201 = vld [vmem:[%s3 + $0x78] sm:$0xff]
    %v202 = vld [vmem:[%s3 + $0x80] sm:$0xff]
    %v203 = vld [vmem:[%s3 + $0x88] sm:$0xff]
    %v204 = vld [vmem:[%s3 + $0x90] sm:$0xff]
    %v205 = vld [vmem:[%s3 + $0x98] sm:$0xff]
    %206 = vmatpush.msra.mxu0 %v201
    %207 = vmatpush.msra.mxu0 %v200
    %208 = vmatpush.msra.mxu0 %v199
    %209 = vmatpush.msra.mxu0 %v198
    %210 = vmatpush.msra.mxu0 %v197
    %211 = vmatpush.msra.mxu0 %v196
    %212 = vmatpush.msra.mxu0 %v195
    %213 = vmatpush.msra.mxu0 %v194
    %214 = vmatpush.msra.mxu0 %v193
    %215 = vmatpush.msra.mxu0 %v192
    %216 = vmatpush.msra.mxu0 %v191
    %217 = vmatpush.msra.mxu0 %v190
    %218 = vmatpush.msra.mxu0 %v189
    %219 = vmatpush.msra.mxu0 %v188
    %220 = vmatpush.msra.mxu0 %v187
    %221 = vmatpush.msra.mxu0 %v186
    %222 = vmatmul.f32.gmra.mxu0 %v117
    %v223 = vpop.f32.mrf.mxu0
    %v224 = vadd.f32 0.0, %v223
    %225 = vdwg.mxu0
    %226 = vmatpush.msra.mxu0 0.0
    %227 = vmatpush.msra.mxu0 0.0
    %228 = vmatpush.msra.mxu0 0.0
    %229 = vmatpush.msra.mxu0 0.0
    %230 = vmatpush.msra.mxu0 0.0
    %231 = vmatpush.msra.mxu0 0.0
    %232 = vmatpush.msra.mxu0 0.0
    %233 = vmatpush.msra.mxu0 0.0
    %234 = vmatpush.msra.mxu0 0.0
    %235 = vmatpush.msra.mxu0 0.0
    %236 = vmatpush.msra.mxu0 0.0
    %237 = vmatpush.msra.mxu0 0.0
    %238 = vmatpush.msra.mxu0 %v205
    %239 = vmatpush.msra.mxu0 %v204
    %240 = vmatpush.msra.mxu0 %v203
    %241 = vmatpush.msra.mxu0 %v202
    %242 = vmatmul.f32.gmra.mxu0 %v142
    %v243 = vpop.f32.mrf.mxu0
    %v244 = vadd.f32 %v224, %v243
    %245 = vdwg.mxu0
    %v246 = vld [vmem:[%s5] sm:$0xff]
    %v247 = vld [vmem:[%s5 + $0x8] sm:$0xff]
    %vm248 = vcmask 130048
    %v250 = vsel %vm248, %v185, 0
    %252 = vmatpush.msra.mxu0 0.0
    %253 = vmatpush.msra.mxu0 0.0
    %254 = vmatpush.msra.mxu0 0.0
    %255 = vmatpush.msra.mxu0 0.0
    %256 = vmatpush.msra.mxu0 0.0
    %257 = vmatpush.msra.mxu0 0.0
    %258 = vmatpush.msra.mxu0 0.0
    %259 = vmatpush.msra.mxu0 0.0
    %260 = vmatpush.msra.mxu0 0.0
    %261 = vmatpush.msra.mxu0 0.0
    %262 = vmatpush.msra.mxu0 0.0
    %263 = vmatpush.msra.mxu0 0.0
    %264 = vmatpush.msra.mxu0 0.0
    %265 = vmatpush.msra.mxu0 0.0
    %266 = vmatpush.msra.mxu0 %v247
    %267 = vmatpush.msra.mxu0 %v246
    %268 = vmatmul.f32.gmra.mxu0 %v250
    %v269 = vpop.f32.mrf.mxu0
    %v270 = vadd.f32 0.0, %v269
    %271 = vdwg.mxu0
    %v272 = vmul.f32 %v244, %v270
    %273 = vst [vmem:[#allocation5] sm:$0x1] %v272
    // Predicated region
    $region30: #{tpu_custom_call.1} parent=1 // pred_check
      _
    $region31: #{tpu_custom_call.1} parent=1 // pred_check_branch
      %275 = sbr.rel (0) target = $region33
    $region32: #{tpu_custom_call.1} parent=1 // pred_region
      %277 = vsyncadd [#allocation4], 0
      %s279 = sshll.u32 [#allocation5], 4
      %s280 = int_to_ptr.vmem [resolvable:$true] %s279
      %s281 = sshll.u32 %s6, 4
      %s282 = int_to_ptr.hbm [resolvable:$true] %s281
      %284 = dma.vmem_to_hbm [thread:$0]  %s280, 16, %s282, [#allocation4]
    $region33: #{tpu_custom_call.1} parent=1 // pred_fallthru
      _
    // Predicated region
    $region34: #{tpu_custom_call.1} parent=1 // pred_check
      _
    $region35: #{tpu_custom_call.1} parent=1 // pred_check_branch
      %286 = sbr.rel (0) target = $region37
    $region36: #{tpu_custom_call.1} parent=1 // pred_region
      %288 = dma.done [#allocation4], 16
    $region37: #{tpu_custom_call.1} parent=1 // pred_fallthru
      _
    %289 = vsyncpa [#allocation3], 1
    %290 = vsyncpa [#allocation4], 1

</llo_original>
